<compile_context>
chip_gen: v7x
topology: tpu7x:2x2x1
jax: 0.10.0
libtpu: 0.0.40
codegen_flags: <defaults>
</compile_context>

<pallas_src>
import functools
import numpy as np

import jax
import jax.numpy as jnp
from jax.experimental import pallas as pl
from jax.experimental.pallas import tpu as pltpu


def _round_up(x: int, m: int) -> int:
    return ((x + m - 1) // m) * m


def _bilinear_matrix(in_size: int, out_size: int) -> np.ndarray:
    """Interpolation matrix M [out, in] reproducing PyTorch F.interpolate
    (mode='bilinear', align_corners=False) along one axis: out = M @ in."""
    scale = in_size / out_size
    dst = np.arange(out_size, dtype=np.float64)
    src = np.maximum((dst + 0.5) * scale - 0.5, 0.0)
    i0 = np.clip(np.floor(src).astype(np.int64), 0, in_size - 1)
    i1 = np.minimum(i0 + 1, in_size - 1)
    w1 = src - i0
    w0 = 1.0 - w1
    m = np.zeros((out_size, in_size), np.float32)
    rows = np.arange(out_size)
    np.add.at(m, (rows, i0), w0.astype(np.float32))
    np.add.at(m, (rows, i1), w1.astype(np.float32))
    return m


def _nearest_indices(in_size: int, out_size: int) -> np.ndarray:
    """PyTorch F.interpolate(mode='nearest') source indices along one axis."""
    scale = in_size / out_size
    idx = np.floor(np.arange(out_size, dtype=np.float64) * scale).astype(np.int32)
    return np.clip(idx, 0, in_size - 1)


def _bilin_thresh_kernel(x_ref, wh_ref, wwT_ref, o_ref, *, thr_logit):
    # x_ref:   (TB, H, W)                 TB masks, native dtype
    # wh_ref:  (max_h_pad, H)   bf16      row (height) interpolation matrix
    # wwT_ref: (W, max_w_pad)   bf16      column (width) interpolation matrix^T
    # o_ref:   (TB, max_h_pad, max_w_pad) int8 {0,1}
    TB, H, W = x_ref.shape
    max_h = wh_ref.shape[0]
    max_w = wwT_ref.shape[1]

    # Width interpolation as one big MXU matmul: M = TB*H fills the rows.
    x = x_ref[...].astype(jnp.bfloat16).reshape(TB * H, W)
    t = jnp.dot(x, wwT_ref[...], preferred_element_type=jnp.float32)   # (TB*H, max_w)
    t = t.reshape(TB, H, max_w).astype(jnp.bfloat16)

    # Height interpolation as a batched matmul (Wh broadcast over the TB masks).
    wh_b = jnp.broadcast_to(wh_ref[...][None, :, :], (TB, max_h, H))
    y = jnp.einsum('boh,bhw->bow', wh_b, t,
                   preferred_element_type=jnp.float32)                 # (TB, max_h, max_w)

    # sigmoid(y) > thr  <=>  y > logit(thr)  (sigmoid is monotone): no exp, no div.
    o_ref[...] = (y > thr_logit).astype(o_ref.dtype)


def _choose_tb(n, h, w, max_h_pad, max_w_pad, in_itemsize):
    """Masks per grid step, sized against a conservative VMEM budget (v7x-safe)."""
    budget = 40 * 1024 * 1024
    per_mask = (
        2 * max_h_pad * max_w_pad          # int8 output block, double-buffered
        + 4 * max_h_pad * max_w_pad        # f32 logits intermediate
        + 4 * h * max_w_pad                # f32 width-interp intermediate
        + 2 * h * w * in_itemsize          # input block, double-buffered
    )
    return int(max(1, min(n, budget // max(per_mask, 1), 64)))


def bilinear_sigmoid_threshold(masks_nhw, max_h, max_w, threshold):
    """masks_nhw: [N, H, W] float -> [N, max_h_pad, max_w_pad] int8 {0,1}.

    Spatial dims are padded (lane/sublane alignment); callers crop to what they
    need (the post-processor crops to per-image sizes <= (max_h, max_w) anyway).
    """
    N, H, W = masks_nhw.shape
    max_h_pad = _round_up(max_h, 32)    # int8 sublane tile
    max_w_pad = _round_up(max_w, 128)   # lane-dense, unmasked output stores

    # Interpolation matrices (bf16 operands for the MXU fast path), zero-padded
    # to the padded output sizes (padded rows/cols are cropped by the caller).
    wh = _bilinear_matrix(H, max_h)                                   # (max_h, H)
    wh = np.pad(wh, ((0, max_h_pad - max_h), (0, 0)))
    wwT = _bilinear_matrix(W, max_w).T                                # (W, max_w)
    wwT = np.pad(wwT, ((0, 0), (0, max_w_pad - max_w)))
    wh = jnp.asarray(wh, dtype=jnp.bfloat16)
    wwT = jnp.asarray(wwT, dtype=jnp.bfloat16)

    # Batch TB masks per grid step; pad N up to a multiple of TB.
    tb = _choose_tb(N, H, W, max_h_pad, max_w_pad, masks_nhw.dtype.itemsize)
    n_steps = -(-N // tb)
    n_pad = n_steps * tb
    x = masks_nhw
    if n_pad != N:
        x = jnp.pad(x, ((0, n_pad - N), (0, 0), (0, 0)))

    # Fold sigmoid+threshold into a logit compare.
    thr = float(threshold)
    if thr <= 0.0:
        thr_logit = -np.inf
    elif thr >= 1.0:
        thr_logit = np.inf
    else:
        thr_logit = float(np.log(thr / (1.0 - thr)))

    kernel = functools.partial(_bilin_thresh_kernel, thr_logit=thr_logit)
    out = pl.pallas_call(
        kernel,
        out_shape=jax.ShapeDtypeStruct((n_pad, max_h_pad, max_w_pad), jnp.int8),
        grid_spec=pltpu.PrefetchScalarGridSpec(
            num_scalar_prefetch=0,
            grid=(n_steps,),
            in_specs=[
                pl.BlockSpec((tb, H, W), lambda n: (n, 0, 0)),
                # Constant index maps -> weight tiles stay resident across steps.
                pl.BlockSpec((max_h_pad, H), lambda n: (0, 0)),
                pl.BlockSpec((W, max_w_pad), lambda n: (0, 0)),
            ],
            out_specs=pl.BlockSpec((tb, max_h_pad, max_w_pad), lambda n: (n, 0, 0)),
        ),
        compiler_params=pltpu.CompilerParams(
            dimension_semantics=("parallel",),
            vmem_limit_bytes=64 * 1024 * 1024,
        ),
    )(x, wh, wwT)
    return out[:N]


class PostProcessSegm:
    """JAX/Pallas port of the PyTorch PostProcessSegm module."""

    def __init__(self, threshold=0.5):
        self.threshold = threshold

    def __call__(self, results, outputs, orig_target_sizes, max_target_sizes):
        assert len(orig_target_sizes) == len(max_target_sizes)
        mts = np.asarray(max_target_sizes)          # [B, 2] (h, w)
        ots = np.asarray(orig_target_sizes)         # [B, 2] (h, w)
        max_h, max_w = int(mts[:, 0].max()), int(mts[:, 1].max())

        pred_masks = outputs['pred_masks']          # [B, Q, H, W]
        B, Q, H, W = pred_masks.shape

        # Hot path in Pallas: bilinear resize + (folded) sigmoid/threshold -> int8.
        flat = pred_masks.reshape(B * Q, H, W)
        up = bilinear_sigmoid_threshold(flat, max_h, max_w, self.threshold)
        up = up.reshape(B, Q, up.shape[-2], up.shape[-1])   # spatially padded

        # Per-image crop + nearest resize (glue; dynamic per-image output shapes).
        # TODO(synk): data-dependent output shapes prevent a single static Pallas
        # kernel for the per-image nearest resize; done with gather indexing here.
        for i in range(B):
            img_h, img_w = int(mts[i, 0]), int(mts[i, 1])
            oh, ow = int(ots[i, 0]), int(ots[i, 1])
            cur = up[i, :, :img_h, :img_w]           # [Q, img_h, img_w] int8
            ri = jnp.asarray(_nearest_indices(img_h, oh))
            ci = jnp.asarray(_nearest_indices(img_w, ow))
            res = cur[:, ri, :][:, :, ci]            # [Q, oh, ow]
            results[i]['masks'] = res[:, None, :, :].astype(jnp.uint8)  # [Q, 1, oh, ow]
        return results


if __name__ == "__main__":
    key = jax.random.PRNGKey(0)

    B, Q, H, W = 2, 4, 16, 16
    pred_masks = jax.random.normal(key, (B, Q, H, W), dtype=jnp.float32)

    outputs = {'pred_masks': pred_masks}
    results = [dict() for _ in range(B)]
    max_target_sizes = jnp.array([[24, 28], [20, 28]], dtype=jnp.int32)
    orig_target_sizes = jnp.array([[30, 34], [26, 36]], dtype=jnp.int32)

    post = PostProcessSegm(threshold=0.5)
    results = post(results, outputs, orig_target_sizes, max_target_sizes)

    for i, r in enumerate(results):
        jax.block_until_ready(r['masks'])
        oh = int(np.asarray(orig_target_sizes)[i, 0])
        ow = int(np.asarray(orig_target_sizes)[i, 1])
        assert r['masks'].shape == (Q, 1, oh, ow)
        assert r['masks'].dtype == jnp.uint8
        vals = np.unique(np.asarray(r['masks']))
        assert np.all(np.isin(vals, [0, 1]))

    print("KERNEL_OK")
</pallas_src>

<mosaic_0001>
module attributes {stable_mosaic.version = 11 : i64} {
  func.func @_bilin_thresh_kernel(%arg0: i32, %arg1: memref<8x16x16xf32, #tpu.memory_space<vmem>>, %arg2: memref<32x16xbf16, #tpu.memory_space<vmem>>, %arg3: memref<16x128xbf16, #tpu.memory_space<vmem>>, %arg4: memref<8x32x128xi8, #tpu.memory_space<vmem>>) attributes {dimension_semantics = [#tpu.dimension_semantics<parallel>], iteration_bounds = array<i64: 1>, scalar_prefetch = 0 : i64, scratch_operands = 0 : i64, tpu.core_type = #tpu.core_type<tc>, window_params = [{transform_indices = @transform_0, window_bounds = array<i64: 8, 16, 16>}, {pipeline_mode = #tpu.pipeline_mode<synchronous>, transform_indices = @transform_1, window_bounds = array<i64: 32, 16>}, {pipeline_mode = #tpu.pipeline_mode<synchronous>, transform_indices = @transform_2, window_bounds = array<i64: 16, 128>}, {transform_indices = @transform_3, window_bounds = array<i64: 8, 32, 128>}]} {
    %c0 = arith.constant 0 : index
    %c0_0 = arith.constant 0 : index
    %c0_1 = arith.constant 0 : index
    %0 = vector.load %arg1[%c0, %c0_0, %c0_1] : memref<8x16x16xf32, #tpu.memory_space<vmem>>, vector<8x16x16xf32>
    %1 = arith.truncf %0 : vector<8x16x16xf32> to vector<8x16x16xbf16>
    %2 = vector.shape_cast %1 : vector<8x16x16xbf16> to vector<128x16xbf16>
    %c0_2 = arith.constant 0 : index
    %c0_3 = arith.constant 0 : index
    %3 = vector.load %arg3[%c0_2, %c0_3] : memref<16x128xbf16, #tpu.memory_space<vmem>>, vector<16x128xbf16>
    %cst = arith.constant dense<0.000000e+00> : vector<128x128xf32>
    %4 = tpu.matmul %2, %3, %cst {dimension_numbers = #tpu.dot_dimension_numbers<[1], [0], [0], [1], [0, 0, 1, 1], [], []>} : vector<128x16xbf16>, vector<16x128xbf16>, vector<128x128xf32> -> vector<128x128xf32>
    %5 = vector.shape_cast %4 : vector<128x128xf32> to vector<8x16x128xf32>
    %6 = arith.truncf %5 : vector<8x16x128xf32> to vector<8x16x128xbf16>
    %c0_4 = arith.constant 0 : index
    %c0_5 = arith.constant 0 : index
    %7 = vector.load %arg2[%c0_4, %c0_5] : memref<32x16xbf16, #tpu.memory_space<vmem>>, vector<32x16xbf16>
    %8 = vector.shape_cast %7 : vector<32x16xbf16> to vector<1x32x16xbf16>
    %9 = vector.shape_cast %8 : vector<1x32x16xbf16> to vector<1x32x16xbf16>
    %10 = vector.broadcast %9 : vector<1x32x16xbf16> to vector<8x32x16xbf16>
    "tpu.trace_start"() <{level = 10 : i32, message = "boh,bhw->bow"}> : () -> ()
    %cst_6 = arith.constant dense<0.000000e+00> : vector<8x32x128xf32>
    %11 = tpu.matmul %10, %6, %cst_6 {dimension_numbers = #tpu.dot_dimension_numbers<[2], [1], [1], [2], [0, 0, 0, 1, 1, 2], [0], [0]>} : vector<8x32x16xbf16>, vector<8x16x128xbf16>, vector<8x32x128xf32> -> vector<8x32x128xf32>
    %cst_7 = arith.constant 0.000000e+00 : f32
    "tpu.trace_stop"() : () -> ()
    %12 = vector.broadcast %cst_7 : f32 to vector<8x32x128xf32>
    %13 = arith.cmpf ogt, %11, %12 : vector<8x32x128xf32>
    %14 = arith.extui %13 : vector<8x32x128xi1> to vector<8x32x128xi8>
    %c0_8 = arith.constant 0 : index
    %c0_9 = arith.constant 0 : index
    %c0_10 = arith.constant 0 : index
    %15 = vector.load %arg4[%c0_8, %c0_9, %c0_10] : memref<8x32x128xi8, #tpu.memory_space<vmem>>, vector<8x32x128xi8>
    tpu.vector_store %arg4[%c0_8, %c0_9, %c0_10], %14 {strides = array<i32>} : memref<8x32x128xi8, #tpu.memory_space<vmem>>, vector<8x32x128xi8>,
    return
  }
  func.func @transform_0(%arg0: i32) -> (i32, i32, i32) {
    %c0_i32 = arith.constant 0 : i32
    %c0_i32_0 = arith.constant 0 : i32
    %c0_i32_1 = arith.constant 0 : i32
    return %arg0, %c0_i32, %c0_i32_0 : i32, i32, i32
  }
  func.func @transform_1(%arg0: i32) -> (i32, i32) {
    %c0_i32 = arith.constant 0 : i32
    %c0_i32_0 = arith.constant 0 : i32
    %c0_i32_1 = arith.constant 0 : i32
    return %c0_i32, %c0_i32_0 : i32, i32
  }
  func.func @transform_2(%arg0: i32) -> (i32, i32) {
    %c0_i32 = arith.constant 0 : i32
    %c0_i32_0 = arith.constant 0 : i32
    %c0_i32_1 = arith.constant 0 : i32
    return %c0_i32, %c0_i32_0 : i32, i32
  }
  func.func @transform_3(%arg0: i32) -> (i32, i32, i32) {
    %c0_i32 = arith.constant 0 : i32
    %c0_i32_0 = arith.constant 0 : i32
    %c0_i32_1 = arith.constant 0 : i32
    return %arg0, %c0_i32, %c0_i32_0 : i32, i32, i32
  }
}

</mosaic_0001>

<llo_original>
// kernel: tpu_custom_call.1
$region0: #{tpu_custom_call.1}
  #allocation0 [shape = 'u32[]', space=smem, size = 0x4, offset = 0x4, fixed_abs, tag = 'smem constant byte address 0x4 - core index']
  #allocation1 [shape = 'u32[144,128]{1,0:T(1,128)}', space=vmem, size = 0x12000, scoped, tag = 'internal scratch']
  %s0 = inlined_call_operand.hbm [shape: f32[8,16,16], index: 0, kind: input, shape index: {}]
  %s1 = inlined_call_operand.hbm [shape: bf16[32,16], index: 1, kind: input, shape index: {}]
  %s2 = inlined_call_operand.hbm [shape: bf16[16,128], index: 2, kind: input, shape index: {}]
  %s3 = inlined_call_operand.hbm [shape: s8[8,32,128], index: 3, kind: output, shape index: {}]
  %s4 = sld [smem:[#allocation0]]
  $region34: #{tpu_custom_call.1} parent=0
    _
  %s6 = ssub.s32 1, %s4
  %s7 = scalar_select 0, %s6, %s4
  $region1: #{tpu_custom_call.1} parent=0
    #allocation2 [shape = 'u8[65536]{0}', space=vmem, size = 0x10000, scoped, tag = 'input window, operand 0, single buffered']
    #allocation3 [shape = 's32[1]{0}', space=sflag, size = 0x4, scoped, tag = 'scoped memory for tpu_custom_call.1']
    #allocation4 [shape = 's32[1]{0}', space=sflag, size = 0x4, scoped, tag = 'scoped memory for tpu_custom_call.1']
    #allocation5 [shape = 'u8[8192]{0}', space=vmem, size = 0x2000, scoped, tag = 'input window, operand 1, single buffered']
    #allocation6 [shape = 's32[1]{0}', space=sflag, size = 0x4, scoped, tag = 'scoped memory for tpu_custom_call.1']
    #allocation7 [shape = 'u8[4096]{0}', space=vmem, size = 0x1000, scoped, tag = 'input window, operand 2, single buffered']
    #allocation8 [shape = 'u8[32768]{0}', space=vmem, size = 0x8000, scoped, tag = 'output window, operand 0, single buffered']
    %8 = vsyncpa [#allocation3], 0
    %9 = vsyncpa [#allocation6], 0
    %10 = vsyncpa [#allocation4], 0
    // Predicated region
    $region2: #{tpu_custom_call.1} parent=1 // pred_check
      _
    $region3: #{tpu_custom_call.1} parent=1 // pred_check_branch
      %12 = sbr.rel (0) target = $region5
    $region4: #{tpu_custom_call.1} parent=1 // pred_region
      %s14 = ssub.s32 2048, 2048
      %15 = vsyncadd [#allocation3], %s14
      %s16 = sshll.u32 [#allocation2], 4
      %s17 = int_to_ptr.vmem [resolvable:$true] %s16
      %22 = dma.hbm_to_vmem [thread:$0]  %s0, 2048, %s17, [#allocation3], 128, 128, 8
    $region5: #{tpu_custom_call.1} parent=1 // pred_fallthru
      _
    // Predicated region
    $region6: #{tpu_custom_call.1} parent=1 // pred_check
      _
    $region7: #{tpu_custom_call.1} parent=1 // pred_check_branch
      %24 = sbr.rel (0) target = $region9
    $region8: #{tpu_custom_call.1} parent=1 // pred_region
      %s26 = ssub.s32 256, 256
      %27 = vsyncadd [#allocation6], %s26
      %s28 = sshll.u32 [#allocation5], 4
      %s29 = int_to_ptr.vmem [resolvable:$true] %s28
      %34 = dma.hbm_to_vmem [thread:$0]  %s1, 256, %s29, [#allocation6], 64, 64, 4
    $region9: #{tpu_custom_call.1} parent=1 // pred_fallthru
      _
    // Predicated region
    $region10: #{tpu_custom_call.1} parent=1 // pred_check
      _
    $region11: #{tpu_custom_call.1} parent=1 // pred_check_branch
      %36 = sbr.rel (0) target = $region13
    $region12: #{tpu_custom_call.1} parent=1 // pred_region
      %s38 = ssub.s32 128, 128
      %39 = vsyncadd [#allocation6], %s38
      %s40 = sshll.u32 [#allocation7], 4
      %s41 = int_to_ptr.vmem [resolvable:$true] %s40
      %46 = dma.hbm_to_vmem [thread:$0]  %s2, 128, %s41, [#allocation6], 64, 64, 4
    $region13: #{tpu_custom_call.1} parent=1 // pred_fallthru
      _
    // Predicated region
    $region14: #{tpu_custom_call.1} parent=1 // pred_check
      _
    $region15: #{tpu_custom_call.1} parent=1 // pred_check_branch
      %48 = sbr.rel (0) target = $region17
    $region16: #{tpu_custom_call.1} parent=1 // pred_region
      %49 = dma.done [#allocation3], 2048
    $region17: #{tpu_custom_call.1} parent=1 // pred_fallthru
      _
    // Predicated region
    $region18: #{tpu_custom_call.1} parent=1 // pred_check
      _
    $region19: #{tpu_custom_call.1} parent=1 // pred_check_branch
      %51 = sbr.rel (0) target = $region21
    $region20: #{tpu_custom_call.1} parent=1 // pred_region
      %52 = dma.done [#allocation6], 256
    $region21: #{tpu_custom_call.1} parent=1 // pred_fallthru
      _
    // Predicated region
    $region22: #{tpu_custom_call.1} parent=1 // pred_check
      _
    $region23: #{tpu_custom_call.1} parent=1 // pred_check_branch
      %54 = sbr.rel (0) target = $region25
    $region24: #{tpu_custom_call.1} parent=1 // pred_region
      %55 = dma.done [#allocation6], 128
    $region25: #{tpu_custom_call.1} parent=1 // pred_fallthru
      _
    %v59 = vld [vmem:[#allocation2] sm:$0xff]
    %v60 = vld [vmem:[#allocation2 + $0x8] sm:$0xff]
    %v61 = vld [vmem:[#allocation2 + $0x10] sm:$0xff]
    %v62 = vld [vmem:[#allocation2 + $0x18] sm:$0xff]
    %v63 = vld [vmem:[#allocation2 + $0x20] sm:$0xff]
    %v64 = vld [vmem:[#allocation2 + $0x28] sm:$0xff]
    %v65 = vld [vmem:[#allocation2 + $0x30] sm:$0xff]
    %v66 = vld [vmem:[#allocation2 + $0x38] sm:$0xff]
    %v67 = vld [vmem:[#allocation2 + $0x40] sm:$0xff]
    %v68 = vld [vmem:[#allocation2 + $0x48] sm:$0xff]
    %v69 = vld [vmem:[#allocation2 + $0x50] sm:$0xff]
    %v70 = vld [vmem:[#allocation2 + $0x58] sm:$0xff]
    %v71 = vld [vmem:[#allocation2 + $0x60] sm:$0xff]
    %v72 = vld [vmem:[#allocation2 + $0x68] sm:$0xff]
    %v73 = vld [vmem:[#allocation2 + $0x70] sm:$0xff]
    %v74 = vld [vmem:[#allocation2 + $0x78] sm:$0xff]
    %v75 = vpack.c.bf16 %v60, %v59
    %v76 = vpack.c.bf16 %v62, %v61
    %v77 = vpack.c.bf16 %v64, %v63
    %v78 = vpack.c.bf16 %v66, %v65
    %v79 = vpack.c.bf16 %v68, %v67
    %v80 = vpack.c.bf16 %v70, %v69
    %v81 = vpack.c.bf16 %v72, %v71
    %v82 = vpack.c.bf16 %v74, %v73
    %v83 = vld [vmem:[#allocation7] sm:$0xf]
    %v84 = vld [vmem:[#allocation7 + $0x4] sm:$0xf]
    %v87 = vunpack.c.l.b16 %v83
    %v88 = vunpack.c.l.b16 %v84
    %v89 = vpack.c.b16 %v88, %v87
    %vm91 = vcmask 130048
    %v93 = vsel %vm91, %v75, 0
    %v96 = vsel %vm91, %v76, 0
    %v99 = vsel %vm91, %v77, 0
    %v102 = vsel %vm91, %v78, 0
    %v105 = vsel %vm91, %v79, 0
    %v108 = vsel %vm91, %v80, 0
    %v111 = vsel %vm91, %v81, 0
    %v114 = vsel %vm91, %v82, 0
    %116 = vmatprep.subr.bf16.mxu0 0
    %117 = vmatpush1.bf16.msra.mxu0 %v89
    %118 = vmatprep.subr.bf16.mxu0 0
    %119 = vmatpush1.bf16.msra.mxu0 0
    %120 = vmatprep.subr.bf16.mxu0 0
    %121 = vmatpush1.bf16.msra.mxu0 0
    %122 = vmatprep.subr.bf16.mxu0 0
    %123 = vmatpush1.bf16.msra.mxu0 0
    %124 = vmatprep.subr.bf16.mxu0 0
    %125 = vmatpush1.bf16.msra.mxu0 0
    %126 = vmatprep.subr.bf16.mxu0 0
    %127 = vmatpush1.bf16.msra.mxu0 0
    %128 = vmatprep.subr.bf16.mxu0 0
    %129 = vmatpush1.bf16.msra.mxu0 0
    %130 = vmatprep.subr.bf16.mxu0 0
    %131 = vmatpush1.bf16.msra.mxu0 0
    %132 = vmatprep.subr.bf16.mxu0 0
    %133 = vmatpush1.bf16.msra.mxu0 0
    %134 = vmatprep.subr.bf16.mxu0 0
    %135 = vmatpush1.bf16.msra.mxu0 0
    %136 = vmatprep.subr.bf16.mxu0 0
    %137 = vmatpush1.bf16.msra.mxu0 0
    %138 = vmatprep.subr.bf16.mxu0 0
    %139 = vmatpush1.bf16.msra.mxu0 0
    %140 = vmatprep.subr.bf16.mxu0 0
    %141 = vmatpush1.bf16.msra.mxu0 0
    %142 = vmatprep.subr.bf16.mxu0 0
    %143 = vmatpush1.bf16.msra.mxu0 0
    %144 = vmatprep.subr.bf16.mxu0 0
    %145 = vmatpush1.bf16.msra.mxu0 0
    %146 = vmatprep.subr.bf16.mxu0 0
    %147 = vmatpush1.bf16.msra.mxu0 0
    %148 = vmatprep.mubr.bf16.mxu0 0
    %149 = vmatmul.mubr.bf16.gmra.mrb[0].mxu0 %v93
    %v150 = vpop.f32.mrb[0].mxu0
    %v151 = vadd.f32 0.0, %v150
    %v152 = vpop.f32.mrb[0].mxu0
    %v153 = vpop.f32.mrb[0].mxu0
    %v154 = vadd.f32 0.0, %v153
    %v155 = vpop.f32.mrb[0].mxu0
    %156 = vmatprep.mubr.bf16.mxu0 0
    %157 = vmatmul.mubr.bf16.gmra.mrb[0].mxu0 %v96
    %v158 = vpop.f32.mrb[0].mxu0
    %v159 = vadd.f32 0.0, %v158
    %v160 = vpop.f32.mrb[0].mxu0
    %v161 = vpop.f32.mrb[0].mxu0
    %v162 = vadd.f32 0.0, %v161
    %v163 = vpop.f32.mrb[0].mxu0
    %164 = vmatprep.mubr.bf16.mxu0 0
    %165 = vmatmul.mubr.bf16.gmra.mrb[0].mxu0 %v99
    %v166 = vpop.f32.mrb[0].mxu0
    %v167 = vadd.f32 0.0, %v166
    %v168 = vpop.f32.mrb[0].mxu0
    %v169 = vpop.f32.mrb[0].mxu0
    %v170 = vadd.f32 0.0, %v169
    %v171 = vpop.f32.mrb[0].mxu0
    %172 = vmatprep.mubr.bf16.mxu0 0
    %173 = vmatmul.mubr.bf16.gmra.mrb[0].mxu0 %v102
    %v174 = vpop.f32.mrb[0].mxu0
    %v175 = vadd.f32 0.0, %v174
    %v176 = vpop.f32.mrb[0].mxu0
    %v177 = vpop.f32.mrb[0].mxu0
    %v178 = vadd.f32 0.0, %v177
    %v179 = vpop.f32.mrb[0].mxu0
    %180 = vmatprep.mubr.bf16.mxu0 0
    %181 = vmatmul.mubr.bf16.gmra.mrb[0].mxu0 %v105
    %v182 = vpop.f32.mrb[0].mxu0
    %v183 = vadd.f32 0.0, %v182
    %v184 = vpop.f32.mrb[0].mxu0
    %v185 = vpop.f32.mrb[0].mxu0
    %v186 = vadd.f32 0.0, %v185
    %v187 = vpop.f32.mrb[0].mxu0
    %188 = vmatprep.mubr.bf16.mxu0 0
    %189 = vmatmul.mubr.bf16.gmra.mrb[0].mxu0 %v108
    %v190 = vpop.f32.mrb[0].mxu0
    %v191 = vadd.f32 0.0, %v190
    %v192 = vpop.f32.mrb[0].mxu0
    %v193 = vpop.f32.mrb[0].mxu0
    %v194 = vadd.f32 0.0, %v193
    %v195 = vpop.f32.mrb[0].mxu0
    %196 = vmatprep.mubr.bf16.mxu0 0
    %197 = vmatmul.mubr.bf16.gmra.mrb[0].mxu0 %v111
    %v198 = vpop.f32.mrb[0].mxu0
    %v199 = vadd.f32 0.0, %v198
    %v200 = vpop.f32.mrb[0].mxu0
    %v201 = vpop.f32.mrb[0].mxu0
    %v202 = vadd.f32 0.0, %v201
    %v203 = vpop.f32.mrb[0].mxu0
    %204 = vmatprep.mubr.bf16.mxu0 0
    %205 = vmatmul.mubr.bf16.gmra.mrb[0].mxu0 %v114
    %v206 = vpop.f32.mrb[0].mxu0
    %v207 = vadd.f32 0.0, %v206
    %v208 = vpop.f32.mrb[0].mxu0
    %v209 = vpop.f32.mrb[0].mxu0
    %v210 = vadd.f32 0.0, %v209
    %v211 = vpop.f32.mrb[0].mxu0
    %212 = vdwg.mxu0
    %v213 = vpack.c.bf16 %v154, %v151
    %v214 = vpack.c.bf16 %v162, %v159
    %v215 = vpack.c.bf16 %v170, %v167
    %v216 = vpack.c.bf16 %v178, %v175
    %v217 = vpack.c.bf16 %v186, %v183
    %v218 = vpack.c.bf16 %v194, %v191
    %v219 = vpack.c.bf16 %v202, %v199
    %v220 = vpack.c.bf16 %v210, %v207
    %v221 = vld [vmem:[#allocation5] sm:$0xf]
    %v222 = vld [vmem:[#allocation5 + $0x4] sm:$0xf]
    %v223 = vld [vmem:[#allocation5 + $0x8] sm:$0xf]
    %v224 = vld [vmem:[#allocation5 + $0xc] sm:$0xf]
    %v229 = vunpack.c.l.b16 %v221
    %v230 = vunpack.c.l.b16 %v222
    %v231 = vunpack.c.l.b16 %v223
    %v232 = vunpack.c.l.b16 %v224
    %v233 = vpack.c.b16 %v230, %v229
    %v234 = vpack.c.b16 %v232, %v231
    %v236 = vsel %vm91, %v233, 0
    %v239 = vsel %vm91, %v234, 0
    %241 = vmatprep.subr.bf16.mxu0 0
    %242 = vmatpush1.bf16.msra.mxu0 %v213
    %243 = vmatprep.subr.bf16.mxu0 0
    %244 = vmatpush1.bf16.msra.mxu0 0
    %245 = vmatprep.subr.bf16.mxu0 0
    %246 = vmatpush1.bf16.msra.mxu0 0
    %247 = vmatprep.subr.bf16.mxu0 0
    %248 = vmatpush1.bf16.msra.mxu0 0
    %249 = vmatprep.subr.bf16.mxu0 0
    %250 = vmatpush1.bf16.msra.mxu0 0
    %251 = vmatprep.subr.bf16.mxu0 0
    %252 = vmatpush1.bf16.msra.mxu0 0
    %253 = vmatprep.subr.bf16.mxu0 0
    %254 = vmatpush1.bf16.msra.mxu0 0
    %255 = vmatprep.subr.bf16.mxu0 0
    %256 = vmatpush1.bf16.msra.mxu0 0
    %257 = vmatprep.subr.bf16.mxu0 0
    %258 = vmatpush1.bf16.msra.mxu0 0
    %259 = vmatprep.subr.bf16.mxu0 0
    %260 = vmatpush1.bf16.msra.mxu0 0
    %261 = vmatprep.subr.bf16.mxu0 0
    %262 = vmatpush1.bf16.msra.mxu0 0
    %263 = vmatprep.subr.bf16.mxu0 0
    %264 = vmatpush1.bf16.msra.mxu0 0
    %265 = vmatprep.subr.bf16.mxu0 0
    %266 = vmatpush1.bf16.msra.mxu0 0
    %267 = vmatprep.subr.bf16.mxu0 0
    %268 = vmatpush1.bf16.msra.mxu0 0
    %269 = vmatprep.subr.bf16.mxu0 0
    %270 = vmatpush1.bf16.msra.mxu0 0
    %271 = vmatprep.subr.bf16.mxu0 0
    %272 = vmatpush1.bf16.msra.mxu0 0
    %273 = vmatprep.mubr.bf16.mxu0 0
    %274 = vmatmul.mubr.bf16.gmra.mrb[0].mxu0 %v236
    %v275 = vpop.f32.mrb[0].mxu0
    %v276 = vadd.f32 0.0, %v275
    %v277 = vpop.f32.mrb[0].mxu0
    %v278 = vpop.f32.mrb[0].mxu0
    %v279 = vadd.f32 0.0, %v278
    %v280 = vpop.f32.mrb[0].mxu0
    %281 = vmatprep.mubr.bf16.mxu0 0
    %282 = vmatmul.mubr.bf16.gmra.mrb[0].mxu0 %v239
    %v283 = vpop.f32.mrb[0].mxu0
    %v284 = vadd.f32 0.0, %v283
    %v285 = vpop.f32.mrb[0].mxu0
    %v286 = vpop.f32.mrb[0].mxu0
    %v287 = vadd.f32 0.0, %v286
    %v288 = vpop.f32.mrb[0].mxu0
    %289 = vdwg.mxu0
    %290 = vmatprep.subr.bf16.mxu0 0
    %291 = vmatpush1.bf16.msra.mxu0 %v214
    %292 = vmatprep.subr.bf16.mxu0 0
    %293 = vmatpush1.bf16.msra.mxu0 0
    %294 = vmatprep.subr.bf16.mxu0 0
    %295 = vmatpush1.bf16.msra.mxu0 0
    %296 = vmatprep.subr.bf16.mxu0 0
    %297 = vmatpush1.bf16.msra.mxu0 0
    %298 = vmatprep.subr.bf16.mxu0 0
    %299 = vmatpush1.bf16.msra.mxu0 0
    %300 = vmatprep.subr.bf16.mxu0 0
    %301 = vmatpush1.bf16.msra.mxu0 0
    %302 = vmatprep.subr.bf16.mxu0 0
    %303 = vmatpush1.bf16.msra.mxu0 0
    %304 = vmatprep.subr.bf16.mxu0 0
    %305 = vmatpush1.bf16.msra.mxu0 0
    %306 = vmatprep.subr.bf16.mxu0 0
    %307 = vmatpush1.bf16.msra.mxu0 0
    %308 = vmatprep.subr.bf16.mxu0 0
    %309 = vmatpush1.bf16.msra.mxu0 0
    %310 = vmatprep.subr.bf16.mxu0 0
    %311 = vmatpush1.bf16.msra.mxu0 0
    %312 = vmatprep.subr.bf16.mxu0 0
    %313 = vmatpush1.bf16.msra.mxu0 0
    %314 = vmatprep.subr.bf16.mxu0 0
    %315 = vmatpush1.bf16.msra.mxu0 0
    %316 = vmatprep.subr.bf16.mxu0 0
    %317 = vmatpush1.bf16.msra.mxu0 0
    %318 = vmatprep.subr.bf16.mxu0 0
    %319 = vmatpush1.bf16.msra.mxu0 0
    %320 = vmatprep.subr.bf16.mxu0 0
    %321 = vmatpush1.bf16.msra.mxu0 0
    %322 = vmatprep.mubr.bf16.mxu0 0
    %323 = vmatmul.mubr.bf16.gmra.mrb[0].mxu0 %v236
    %v324 = vpop.f32.mrb[0].mxu0
    %v325 = vadd.f32 0.0, %v324
    %v326 = vpop.f32.mrb[0].mxu0
    %v327 = vpop.f32.mrb[0].mxu0
    %v328 = vadd.f32 0.0, %v327
    %v329 = vpop.f32.mrb[0].mxu0
    %330 = vmatprep.mubr.bf16.mxu0 0
    %331 = vmatmul.mubr.bf16.gmra.mrb[0].mxu0 %v239
    %v332 = vpop.f32.mrb[0].mxu0
    %v333 = vadd.f32 0.0, %v332
    %v334 = vpop.f32.mrb[0].mxu0
    %v335 = vpop.f32.mrb[0].mxu0
    %v336 = vadd.f32 0.0, %v335
    %v337 = vpop.f32.mrb[0].mxu0
    %338 = vdwg.mxu0
    %339 = vmatprep.subr.bf16.mxu0 0
    %340 = vmatpush1.bf16.msra.mxu0 %v215
    %341 = vmatprep.subr.bf16.mxu0 0
    %342 = vmatpush1.bf16.msra.mxu0 0
    %343 = vmatprep.subr.bf16.mxu0 0
    %344 = vmatpush1.bf16.msra.mxu0 0
    %345 = vmatprep.subr.bf16.mxu0 0
    %346 = vmatpush1.bf16.msra.mxu0 0
    %347 = vmatprep.subr.bf16.mxu0 0
    %348 = vmatpush1.bf16.msra.mxu0 0
    %349 = vmatprep.subr.bf16.mxu0 0
    %350 = vmatpush1.bf16.msra.mxu0 0
    %351 = vmatprep.subr.bf16.mxu0 0
    %352 = vmatpush1.bf16.msra.mxu0 0
    %353 = vmatprep.subr.bf16.mxu0 0
    %354 = vmatpush1.bf16.msra.mxu0 0
    %355 = vmatprep.subr.bf16.mxu0 0
    %356 = vmatpush1.bf16.msra.mxu0 0
    %357 = vmatprep.subr.bf16.mxu0 0
    %358 = vmatpush1.bf16.msra.mxu0 0
    %359 = vmatprep.subr.bf16.mxu0 0
    %360 = vmatpush1.bf16.msra.mxu0 0
    %361 = vmatprep.subr.bf16.mxu0 0
    %362 = vmatpush1.bf16.msra.mxu0 0
    %363 = vmatprep.subr.bf16.mxu0 0
    %364 = vmatpush1.bf16.msra.mxu0 0
    %365 = vmatprep.subr.bf16.mxu0 0
    %366 = vmatpush1.bf16.msra.mxu0 0
    %367 = vmatprep.subr.bf16.mxu0 0
    %368 = vmatpush1.bf16.msra.mxu0 0
    %369 = vmatprep.subr.bf16.mxu0 0
    %370 = vmatpush1.bf16.msra.mxu0 0
    %371 = vmatprep.mubr.bf16.mxu0 0
    %372 = vmatmul.mubr.bf16.gmra.mrb[0].mxu0 %v236
    %v373 = vpop.f32.mrb[0].mxu0
    %v374 = vadd.f32 0.0, %v373
    %v375 = vpop.f32.mrb[0].mxu0
    %v376 = vpop.f32.mrb[0].mxu0
    %v377 = vadd.f32 0.0, %v376
    %v378 = vpop.f32.mrb[0].mxu0
    %379 = vmatprep.mubr.bf16.mxu0 0
    %380 = vmatmul.mubr.bf16.gmra.mrb[0].mxu0 %v239
    %v381 = vpop.f32.mrb[0].mxu0
    %v382 = vadd.f32 0.0, %v381
    %v383 = vpop.f32.mrb[0].mxu0
    %v384 = vpop.f32.mrb[0].mxu0
    %v385 = vadd.f32 0.0, %v384
    %v386 = vpop.f32.mrb[0].mxu0
    %387 = vdwg.mxu0
    %388 = vmatprep.subr.bf16.mxu0 0
    %389 = vmatpush1.bf16.msra.mxu0 %v216
    %390 = vmatprep.subr.bf16.mxu0 0
    %391 = vmatpush1.bf16.msra.mxu0 0
    %392 = vmatprep.subr.bf16.mxu0 0
    %393 = vmatpush1.bf16.msra.mxu0 0
    %394 = vmatprep.subr.bf16.mxu0 0
    %395 = vmatpush1.bf16.msra.mxu0 0
    %396 = vmatprep.subr.bf16.mxu0 0
    %397 = vmatpush1.bf16.msra.mxu0 0
    %398 = vmatprep.subr.bf16.mxu0 0
    %399 = vmatpush1.bf16.msra.mxu0 0
    %400 = vmatprep.subr.bf16.mxu0 0
    %401 = vmatpush1.bf16.msra.mxu0 0
    %402 = vmatprep.subr.bf16.mxu0 0
    %403 = vmatpush1.bf16.msra.mxu0 0
    %404 = vmatprep.subr.bf16.mxu0 0
    %405 = vmatpush1.bf16.msra.mxu0 0
    %406 = vmatprep.subr.bf16.mxu0 0
    %407 = vmatpush1.bf16.msra.mxu0 0
    %408 = vmatprep.subr.bf16.mxu0 0
    %409 = vmatpush1.bf16.msra.mxu0 0
    %410 = vmatprep.subr.bf16.mxu0 0
    %411 = vmatpush1.bf16.msra.mxu0 0
    %412 = vmatprep.subr.bf16.mxu0 0
    %413 = vmatpush1.bf16.msra.mxu0 0
    %414 = vmatprep.subr.bf16.mxu0 0
    %415 = vmatpush1.bf16.msra.mxu0 0
    %416 = vmatprep.subr.bf16.mxu0 0
    %417 = vmatpush1.bf16.msra.mxu0 0
    %418 = vmatprep.subr.bf16.mxu0 0
    %419 = vmatpush1.bf16.msra.mxu0 0
    %420 = vmatprep.mubr.bf16.mxu0 0
    %421 = vmatmul.mubr.bf16.gmra.mrb[0].mxu0 %v236
    %v422 = vpop.f32.mrb[0].mxu0
    %v423 = vadd.f32 0.0, %v422
    %v424 = vpop.f32.mrb[0].mxu0
    %v425 = vpop.f32.mrb[0].mxu0
    %v426 = vadd.f32 0.0, %v425
    %v427 = vpop.f32.mrb[0].mxu0
    %428 = vmatprep.mubr.bf16.mxu0 0
    %429 = vmatmul.mubr.bf16.gmra.mrb[0].mxu0 %v239
    %v430 = vpop.f32.mrb[0].mxu0
    %v431 = vadd.f32 0.0, %v430
    %v432 = vpop.f32.mrb[0].mxu0
    %v433 = vpop.f32.mrb[0].mxu0
    %v434 = vadd.f32 0.0, %v433
    %v435 = vpop.f32.mrb[0].mxu0
    %436 = vdwg.mxu0
    %437 = vmatprep.subr.bf16.mxu0 0
    %438 = vmatpush1.bf16.msra.mxu0 %v217
    %439 = vmatprep.subr.bf16.mxu0 0
    %440 = vmatpush1.bf16.msra.mxu0 0
    %441 = vmatprep.subr.bf16.mxu0 0
    %442 = vmatpush1.bf16.msra.mxu0 0
    %443 = vmatprep.subr.bf16.mxu0 0
    %444 = vmatpush1.bf16.msra.mxu0 0
    %445 = vmatprep.subr.bf16.mxu0 0
    %446 = vmatpush1.bf16.msra.mxu0 0
    %447 = vmatprep.subr.bf16.mxu0 0
    %448 = vmatpush1.bf16.msra.mxu0 0
    %449 = vmatprep.subr.bf16.mxu0 0
    %450 = vmatpush1.bf16.msra.mxu0 0
    %451 = vmatprep.subr.bf16.mxu0 0
    %452 = vmatpush1.bf16.msra.mxu0 0
    %453 = vmatprep.subr.bf16.mxu0 0
    %454 = vmatpush1.bf16.msra.mxu0 0
    %455 = vmatprep.subr.bf16.mxu0 0
    %456 = vmatpush1.bf16.msra.mxu0 0
    %457 = vmatprep.subr.bf16.mxu0 0
    %458 = vmatpush1.bf16.msra.mxu0 0
    %459 = vmatprep.subr.bf16.mxu0 0
    %460 = vmatpush1.bf16.msra.mxu0 0
    %461 = vmatprep.subr.bf16.mxu0 0
    %462 = vmatpush1.bf16.msra.mxu0 0
    %463 = vmatprep.subr.bf16.mxu0 0
    %464 = vmatpush1.bf16.msra.mxu0 0
    %465 = vmatprep.subr.bf16.mxu0 0
    %466 = vmatpush1.bf16.msra.mxu0 0
    %467 = vmatprep.subr.bf16.mxu0 0
    %468 = vmatpush1.bf16.msra.mxu0 0
    %469 = vmatprep.mubr.bf16.mxu0 0
    %470 = vmatmul.mubr.bf16.gmra.mrb[0].mxu0 %v236
    %v471 = vpop.f32.mrb[0].mxu0
    %v472 = vadd.f32 0.0, %v471
    %v473 = vpop.f32.mrb[0].mxu0
    %v474 = vpop.f32.mrb[0].mxu0
    %v475 = vadd.f32 0.0, %v474
    %v476 = vpop.f32.mrb[0].mxu0
    %477 = vmatprep.mubr.bf16.mxu0 0
    %478 = vmatmul.mubr.bf16.gmra.mrb[0].mxu0 %v239
    %v479 = vpop.f32.mrb[0].mxu0
    %v480 = vadd.f32 0.0, %v479
    %v481 = vpop.f32.mrb[0].mxu0
    %v482 = vpop.f32.mrb[0].mxu0
    %v483 = vadd.f32 0.0, %v482
    %v484 = vpop.f32.mrb[0].mxu0
    %485 = vdwg.mxu0
    %486 = vmatprep.subr.bf16.mxu0 0
    %487 = vmatpush1.bf16.msra.mxu0 %v218
    %488 = vmatprep.subr.bf16.mxu0 0
    %489 = vmatpush1.bf16.msra.mxu0 0
    %490 = vmatprep.subr.bf16.mxu0 0
    %491 = vmatpush1.bf16.msra.mxu0 0
    %492 = vmatprep.subr.bf16.mxu0 0
    %493 = vmatpush1.bf16.msra.mxu0 0
    %494 = vmatprep.subr.bf16.mxu0 0
    %495 = vmatpush1.bf16.msra.mxu0 0
    %496 = vmatprep.subr.bf16.mxu0 0
    %497 = vmatpush1.bf16.msra.mxu0 0
    %498 = vmatprep.subr.bf16.mxu0 0
    %499 = vmatpush1.bf16.msra.mxu0 0
    %500 = vmatprep.subr.bf16.mxu0 0
    %501 = vmatpush1.bf16.msra.mxu0 0
    %502 = vmatprep.subr.bf16.mxu0 0
    %503 = vmatpush1.bf16.msra.mxu0 0
    %504 = vmatprep.subr.bf16.mxu0 0
    %505 = vmatpush1.bf16.msra.mxu0 0
    %506 = vmatprep.subr.bf16.mxu0 0
    %507 = vmatpush1.bf16.msra.mxu0 0
    %508 = vmatprep.subr.bf16.mxu0 0
    %509 = vmatpush1.bf16.msra.mxu0 0
    %510 = vmatprep.subr.bf16.mxu0 0
    %511 = vmatpush1.bf16.msra.mxu0 0
    %512 = vmatprep.subr.bf16.mxu0 0
    %513 = vmatpush1.bf16.msra.mxu0 0
    %514 = vmatprep.subr.bf16.mxu0 0
    %515 = vmatpush1.bf16.msra.mxu0 0
    %516 = vmatprep.subr.bf16.mxu0 0
    %517 = vmatpush1.bf16.msra.mxu0 0
    %518 = vmatprep.mubr.bf16.mxu0 0
    %519 = vmatmul.mubr.bf16.gmra.mrb[0].mxu0 %v236
    %v520 = vpop.f32.mrb[0].mxu0
    %v521 = vadd.f32 0.0, %v520
    %v522 = vpop.f32.mrb[0].mxu0
    %v523 = vpop.f32.mrb[0].mxu0
    %v524 = vadd.f32 0.0, %v523
    %v525 = vpop.f32.mrb[0].mxu0
    %526 = vmatprep.mubr.bf16.mxu0 0
    %527 = vmatmul.mubr.bf16.gmra.mrb[0].mxu0 %v239
    %v528 = vpop.f32.mrb[0].mxu0
    %v529 = vadd.f32 0.0, %v528
    %v530 = vpop.f32.mrb[0].mxu0
    %v531 = vpop.f32.mrb[0].mxu0
    %v532 = vadd.f32 0.0, %v531
    %v533 = vpop.f32.mrb[0].mxu0
    %534 = vdwg.mxu0
    %535 = vmatprep.subr.bf16.mxu0 0
    %536 = vmatpush1.bf16.msra.mxu0 %v219
    %537 = vmatprep.subr.bf16.mxu0 0
    %538 = vmatpush1.bf16.msra.mxu0 0
    %539 = vmatprep.subr.bf16.mxu0 0
    %540 = vmatpush1.bf16.msra.mxu0 0
    %541 = vmatprep.subr.bf16.mxu0 0
    %542 = vmatpush1.bf16.msra.mxu0 0
    %543 = vmatprep.subr.bf16.mxu0 0
    %544 = vmatpush1.bf16.msra.mxu0 0
    %545 = vmatprep.subr.bf16.mxu0 0
    %546 = vmatpush1.bf16.msra.mxu0 0
    %547 = vmatprep.subr.bf16.mxu0 0
    %548 = vmatpush1.bf16.msra.mxu0 0
    %549 = vmatprep.subr.bf16.mxu0 0
    %550 = vmatpush1.bf16.msra.mxu0 0
    %551 = vmatprep.subr.bf16.mxu0 0
    %552 = vmatpush1.bf16.msra.mxu0 0
    %553 = vmatprep.subr.bf16.mxu0 0
    %554 = vmatpush1.bf16.msra.mxu0 0
    %555 = vmatprep.subr.bf16.mxu0 0
    %556 = vmatpush1.bf16.msra.mxu0 0
    %557 = vmatprep.subr.bf16.mxu0 0
    %558 = vmatpush1.bf16.msra.mxu0 0
    %559 = vmatprep.subr.bf16.mxu0 0
    %560 = vmatpush1.bf16.msra.mxu0 0
    %561 = vmatprep.subr.bf16.mxu0 0
    %562 = vmatpush1.bf16.msra.mxu0 0
    %563 = vmatprep.subr.bf16.mxu0 0
    %564 = vmatpush1.bf16.msra.mxu0 0
    %565 = vmatprep.subr.bf16.mxu0 0
    %566 = vmatpush1.bf16.msra.mxu0 0
    %567 = vmatprep.mubr.bf16.mxu0 0
    %568 = vmatmul.mubr.bf16.gmra.mrb[0].mxu0 %v236
    %v569 = vpop.f32.mrb[0].mxu0
    %v570 = vadd.f32 0.0, %v569
    %v571 = vpop.f32.mrb[0].mxu0
    %v572 = vpop.f32.mrb[0].mxu0
    %v573 = vadd.f32 0.0, %v572
    %v574 = vpop.f32.mrb[0].mxu0
    %575 = vmatprep.mubr.bf16.mxu0 0
    %576 = vmatmul.mubr.bf16.gmra.mrb[0].mxu0 %v239
    %v577 = vpop.f32.mrb[0].mxu0
    %v578 = vadd.f32 0.0, %v577
    %v579 = vpop.f32.mrb[0].mxu0
    %v580 = vpop.f32.mrb[0].mxu0
    %v581 = vadd.f32 0.0, %v580
    %v582 = vpop.f32.mrb[0].mxu0
    %583 = vdwg.mxu0
    %584 = vmatprep.subr.bf16.mxu0 0
    %585 = vmatpush1.bf16.msra.mxu0 %v220
    %586 = vmatprep.subr.bf16.mxu0 0
    %587 = vmatpush1.bf16.msra.mxu0 0
    %588 = vmatprep.subr.bf16.mxu0 0
    %589 = vmatpush1.bf16.msra.mxu0 0
    %590 = vmatprep.subr.bf16.mxu0 0
    %591 = vmatpush1.bf16.msra.mxu0 0
    %592 = vmatprep.subr.bf16.mxu0 0
    %593 = vmatpush1.bf16.msra.mxu0 0
    %594 = vmatprep.subr.bf16.mxu0 0
    %595 = vmatpush1.bf16.msra.mxu0 0
    %596 = vmatprep.subr.bf16.mxu0 0
    %597 = vmatpush1.bf16.msra.mxu0 0
    %598 = vmatprep.subr.bf16.mxu0 0
    %599 = vmatpush1.bf16.msra.mxu0 0
    %600 = vmatprep.subr.bf16.mxu0 0
    %601 = vmatpush1.bf16.msra.mxu0 0
    %602 = vmatprep.subr.bf16.mxu0 0
    %603 = vmatpush1.bf16.msra.mxu0 0
    %604 = vmatprep.subr.bf16.mxu0 0
    %605 = vmatpush1.bf16.msra.mxu0 0
    %606 = vmatprep.subr.bf16.mxu0 0
    %607 = vmatpush1.bf16.msra.mxu0 0
    %608 = vmatprep.subr.bf16.mxu0 0
    %609 = vmatpush1.bf16.msra.mxu0 0
    %610 = vmatprep.subr.bf16.mxu0 0
    %611 = vmatpush1.bf16.msra.mxu0 0
    %612 = vmatprep.subr.bf16.mxu0 0
    %613 = vmatpush1.bf16.msra.mxu0 0
    %614 = vmatprep.subr.bf16.mxu0 0
    %615 = vmatpush1.bf16.msra.mxu0 0
    %616 = vmatprep.mubr.bf16.mxu0 0
    %617 = vmatmul.mubr.bf16.gmra.mrb[0].mxu0 %v236
    %v618 = vpop.f32.mrb[0].mxu0
    %v619 = vadd.f32 0.0, %v618
    %v620 = vpop.f32.mrb[0].mxu0
    %v621 = vpop.f32.mrb[0].mxu0
    %v622 = vadd.f32 0.0, %v621
    %v623 = vpop.f32.mrb[0].mxu0
    %624 = vmatprep.mubr.bf16.mxu0 0
    %625 = vmatmul.mubr.bf16.gmra.mrb[0].mxu0 %v239
    %v626 = vpop.f32.mrb[0].mxu0
    %v627 = vadd.f32 0.0, %v626
    %v628 = vpop.f32.mrb[0].mxu0
    %v629 = vpop.f32.mrb[0].mxu0
    %v630 = vadd.f32 0.0, %v629
    %v631 = vpop.f32.mrb[0].mxu0
    %632 = vdwg.mxu0
    %vm633 = vcmp.gt.f32.partialorder %v276, 0.0
    %vm634 = vcmp.gt.f32.partialorder %v279, 0.0
    %vm635 = vcmp.gt.f32.partialorder %v284, 0.0
    %vm636 = vcmp.gt.f32.partialorder %v287, 0.0
    %vm637 = vcmp.gt.f32.partialorder %v325, 0.0
    %vm638 = vcmp.gt.f32.partialorder %v328, 0.0
    %vm639 = vcmp.gt.f32.partialorder %v333, 0.0
    %vm640 = vcmp.gt.f32.partialorder %v336, 0.0
    %vm641 = vcmp.gt.f32.partialorder %v374, 0.0
    %vm642 = vcmp.gt.f32.partialorder %v377, 0.0
    %vm643 = vcmp.gt.f32.partialorder %v382, 0.0
    %vm644 = vcmp.gt.f32.partialorder %v385, 0.0
    %vm645 = vcmp.gt.f32.partialorder %v423, 0.0
    %vm646 = vcmp.gt.f32.partialorder %v426, 0.0
    %vm647 = vcmp.gt.f32.partialorder %v431, 0.0
    %vm648 = vcmp.gt.f32.partialorder %v434, 0.0
    %vm649 = vcmp.gt.f32.partialorder %v472, 0.0
    %vm650 = vcmp.gt.f32.partialorder %v475, 0.0
    %vm651 = vcmp.gt.f32.partialorder %v480, 0.0
    %vm652 = vcmp.gt.f32.partialorder %v483, 0.0
    %vm653 = vcmp.gt.f32.partialorder %v521, 0.0
    %vm654 = vcmp.gt.f32.partialorder %v524, 0.0
    %vm655 = vcmp.gt.f32.partialorder %v529, 0.0
    %vm656 = vcmp.gt.f32.partialorder %v532, 0.0
    %vm657 = vcmp.gt.f32.partialorder %v570, 0.0
    %vm658 = vcmp.gt.f32.partialorder %v573, 0.0
    %vm659 = vcmp.gt.f32.partialorder %v578, 0.0
    %vm660 = vcmp.gt.f32.partialorder %v581, 0.0
    %vm661 = vcmp.gt.f32.partialorder %v619, 0.0
    %vm662 = vcmp.gt.f32.partialorder %v622, 0.0
    %vm663 = vcmp.gt.f32.partialorder %v627, 0.0
    %vm664 = vcmp.gt.f32.partialorder %v630, 0.0
    %vm665 = vmpackc.low %vm634, %vm633
    %vm666 = vmpackc.low %vm636, %vm635
    %vm667 = vmpackc.even %vm666, %vm665
    %vm668 = vmpackc.low %vm638, %vm637
    %vm669 = vmpackc.low %vm640, %vm639
    %vm670 = vmpackc.even %vm669, %vm668
    %vm671 = vmpackc.low %vm642, %vm641
    %vm672 = vmpackc.low %vm644, %vm643
    %vm673 = vmpackc.even %vm672, %vm671
    %vm674 = vmpackc.low %vm646, %vm645
    %vm675 = vmpackc.low %vm648, %vm647
    %vm676 = vmpackc.even %vm675, %vm674
    %vm677 = vmpackc.low %vm650, %vm649
    %vm678 = vmpackc.low %vm652, %vm651
    %vm679 = vmpackc.even %vm678, %vm677
    %vm680 = vmpackc.low %vm654, %vm653
    %vm681 = vmpackc.low %vm656, %vm655
    %vm682 = vmpackc.even %vm681, %vm680
    %vm683 = vmpackc.low %vm658, %vm657
    %vm684 = vmpackc.low %vm660, %vm659
    %vm685 = vmpackc.even %vm684, %vm683
    %vm686 = vmpackc.low %vm662, %vm661
    %vm687 = vmpackc.low %vm664, %vm663
    %vm688 = vmpackc.even %vm687, %vm686
    %v689 = vsel %vm667, 16843009, 0
    %v690 = vsel %vm670, 16843009, 0
    %v691 = vsel %vm673, 16843009, 0
    %v692 = vsel %vm676, 16843009, 0
    %v693 = vsel %vm679, 16843009, 0
    %v694 = vsel %vm682, 16843009, 0
    %v695 = vsel %vm685, 16843009, 0
    %v696 = vsel %vm688, 16843009, 0
    %697 = vst [vmem:[#allocation8] sm:$0xff] %v689
    %698 = vst [vmem:[#allocation8 + $0x8] sm:$0xff] %v690
    %699 = vst [vmem:[#allocation8 + $0x10] sm:$0xff] %v691
    %700 = vst [vmem:[#allocation8 + $0x18] sm:$0xff] %v692
    %701 = vst [vmem:[#allocation8 + $0x20] sm:$0xff] %v693
    %702 = vst [vmem:[#allocation8 + $0x28] sm:$0xff] %v694
    %703 = vst [vmem:[#allocation8 + $0x30] sm:$0xff] %v695
    %704 = vst [vmem:[#allocation8 + $0x38] sm:$0xff] %v696
    // Predicated region
    $region26: #{tpu_custom_call.1} parent=1 // pred_check
      _
    $region27: #{tpu_custom_call.1} parent=1 // pred_check_branch
      %706 = sbr.rel (0) target = $region29
    $region28: #{tpu_custom_call.1} parent=1 // pred_region
      %s708 = ssub.s32 1024, 1024
      %709 = vsyncadd [#allocation4], %s708
      %s710 = sshll.u32 [#allocation8], 4
      %s711 = int_to_ptr.vmem [resolvable:$true] %s710
      %716 = dma.vmem_to_hbm [thread:$0]  %s711, 1024, %s3, [#allocation4], 128, 128, 8
    $region29: #{tpu_custom_call.1} parent=1 // pred_fallthru
      _
    // Predicated region
    $region30: #{tpu_custom_call.1} parent=1 // pred_check
      _
    $region31: #{tpu_custom_call.1} parent=1 // pred_check_branch
      %718 = sbr.rel (0) target = $region33
    $region32: #{tpu_custom_call.1} parent=1 // pred_region
      %719 = dma.done [#allocation4], 1024
    $region33: #{tpu_custom_call.1} parent=1 // pred_fallthru
      _
    %720 = vsyncpa [#allocation3], 1
    %721 = vsyncpa [#allocation6], 1
    %722 = vsyncpa [#allocation4], 1

</llo_original>
